<compile_context>
chip_gen: v7x
topology: tpu7x:2x2x1
jax: 0.10.0
libtpu: 0.0.40
codegen_flags: <defaults>
</compile_context>

<pallas_src>
import math
from functools import lru_cache, partial

import jax
import jax.numpy as jnp
from jax.experimental import pallas as pl
from jax.experimental.pallas import tpu as pltpu

_TARGET_BLOCK_BYTES = 4 << 20   # ~4 MiB blocks: ~roofline, fewer grid steps
_FUSED_MARGIN_BYTES = 2 << 20   # headroom for compiler-internal scratch


# ----------------------------------------------------------------------------
# generation-aware VMEM budget
# ----------------------------------------------------------------------------
@lru_cache(maxsize=1)
def _vmem_capacity_bytes():
    """Physical per-core VMEM (128 MiB v5e/v6e, 64 MiB v7x); conservative fallback."""
    try:
        info = pltpu.get_tpu_info()
        for name in ("vmem_capacity_bytes", "vmem_bytes", "vmem_size_bytes"):
            v = getattr(info, name, None)
            if v:
                return int(v)
    except Exception:
        pass
    return 64 << 20  # smallest across generations (v7x per-TC)


# ----------------------------------------------------------------------------
# tile selection: largest 128-multiple divisor of P_pad under the byte budget
# (P_pad is always a multiple of 128, so 128 itself always qualifies)
# ----------------------------------------------------------------------------
def _pick_spatial_tile(P_pad, C, itemsize, target_bytes=_TARGET_BLOCK_BYTES):
    cap = max(128, target_bytes // (C * itemsize))
    best = 128
    t = 128
    limit = min(P_pad, cap)
    while t <= limit:
        if P_pad % t == 0:
            best = t
        t += 128
    return best


# ----------------------------------------------------------------------------
# fused single-pass kernel: sum -> squeeze -> excite -> sigmoid -> rescale
# ----------------------------------------------------------------------------
def _make_fused_kernel(inv_p):
    def kernel(u_ref, w_ref, o_ref):
        u = u_ref[...]                                                 # (1, C, Pp)
        mean_col = (jnp.sum(u.astype(jnp.float32), axis=-1, keepdims=True)[0]
                    * inv_p)                                           # (C, 1)
        w_sq_t = w_ref[0].astype(jnp.float32)                          # (C, C//2) = Wsq.T
        w_ex = w_ref[1].astype(jnp.float32)                            # (C, C//2) = Wex
        # squeeze:  s[h] = sum_c Wsq[h, c] * mean[c]   -> (1, C//2)
        s = jnp.sum(w_sq_t * mean_col, axis=0, keepdims=True)
        # excite:   e[c] = sum_h Wex[c, h] * s[h]      -> (C, 1)
        e = jnp.sum(w_ex * s, axis=-1, keepdims=True)
        z = 1.0 / (1.0 + jnp.exp(-e))                                  # sigmoid, (C, 1)
        o_ref[...] = (u.astype(jnp.float32) * z[None]).astype(o_ref.dtype)
    return kernel


# ----------------------------------------------------------------------------
# two-pass fallback, kernel 1: spatial reduction + squeeze/excite + sigmoid
# ----------------------------------------------------------------------------
def _make_reduce_se_kernel(inv_p):
    def kernel(u_ref, w_ref, z_ref, acc_ref):
        i = pl.program_id(1)

        @pl.when(i == 0)
        def _init():
            acc_ref[...] = jnp.zeros_like(acc_ref)

        # u_ref: (1, C, tP) -> per-channel partial sums in f32
        acc_ref[...] += jnp.sum(u_ref[...].astype(jnp.float32),
                                axis=-1, keepdims=True)

        @pl.when(i == pl.num_programs(1) - 1)
        def _finalize():
            mean_col = acc_ref[0] * inv_p                  # (C, 1)
            w_sq_t = w_ref[0].astype(jnp.float32)          # (C, C//2) = Wsq.T
            w_ex = w_ref[1].astype(jnp.float32)            # (C, C//2) = Wex
            s = jnp.sum(w_sq_t * mean_col, axis=0, keepdims=True)   # (1, C//2)
            e = jnp.sum(w_ex * s, axis=-1, keepdims=True)           # (C, 1)
            z = 1.0 / (1.0 + jnp.exp(-e))
            z_ref[...] = z[None].astype(z_ref.dtype)       # (1, C, 1)

    return kernel


# ----------------------------------------------------------------------------
# two-pass fallback, kernel 2: lane-dense broadcast rescale  out = U * z
# ----------------------------------------------------------------------------
def _scale_kernel(u_ref, z_ref, o_ref):
    o_ref[...] = (u_ref[...].astype(jnp.float32) * z_ref[...]).astype(o_ref.dtype)


# ----------------------------------------------------------------------------
# forward
# ----------------------------------------------------------------------------
@partial(jax.jit, static_argnames=("force_two_pass",))
def cse3d_forward(U, w_sq, w_ex, *, force_two_pass=False):
    """U: (N, C, D, H, W); w_sq: (C//2, C); w_ex: (C, C//2)."""
    N, C, D, H, W = U.shape
    Ch = C // 2
    P = D * H * W
    itemsize = U.dtype.itemsize

    u3 = U.reshape(N, C, P)                         # free: contiguous trailing dims
    P_pad = ((P + 127) // 128) * 128                # keep every block lane-dense
    if P_pad != P:
        u3 = jnp.pad(u3, ((0, 0), (0, 0), (0, P_pad - P)))  # zeros: no effect on sums
    inv_p = 1.0 / P                                 # true element count for the mean

    w_pack = jnp.stack([w_sq.T, w_ex], axis=0)      # (2, C, Ch): one constant window

    vmem_cap = _vmem_capacity_bytes()
    vmem_limit = int(vmem_cap // 2)                 # 64 MiB v5e/v6e, 32 MiB v7x

    # fused-path residency: double-buffered (1,C,Pp) in + out blocks + weights
    fused_need = (4 * C * P_pad * itemsize
                  + 4 * C * Ch * w_pack.dtype.itemsize
                  + _FUSED_MARGIN_BYTES)
    use_fused = (not force_two_pass) and fused_need <= vmem_limit

    se_flops = 2 * 2 * C * Ch                       # squeeze + excite matvecs per n

    if use_fused:
        ce = pl.CostEstimate(
            flops=int(2 * N * C * P_pad + N * se_flops),
            transcendentals=int(N * C),
            bytes_accessed=int(2 * N * C * P_pad * itemsize + 2 * C * Ch * 4))
        out3 = pl.pallas_call(
            _make_fused_kernel(inv_p),
            out_shape=jax.ShapeDtypeStruct((N, C, P_pad), U.dtype),
            grid_spec=pltpu.PrefetchScalarGridSpec(
                num_scalar_prefetch=0,
                grid=(N,),
                in_specs=[
                    pl.BlockSpec((1, C, P_pad), lambda n: (n, 0, 0)),
                    pl.BlockSpec((2, C, Ch), lambda n: (0, 0, 0)),
                ],
                out_specs=pl.BlockSpec((1, C, P_pad), lambda n: (n, 0, 0)),
            ),
            compiler_params=pltpu.CompilerParams(
                dimension_semantics=("parallel",),
                vmem_limit_bytes=vmem_limit),
            cost_estimate=ce,
        )(u3, w_pack)
    else:
        tP = _pick_spatial_tile(P_pad, C, itemsize)
        nblk = P_pad // tP

        # ---- pass 1: pooled means -> squeeze -> excite -> sigmoid, fused ----
        ce1 = pl.CostEstimate(
            flops=int(N * C * P_pad + N * se_flops),
            transcendentals=int(N * C),
            bytes_accessed=int(N * C * P_pad * itemsize + N * C * 4 + 2 * C * Ch * 4))
        z = pl.pallas_call(
            _make_reduce_se_kernel(inv_p),
            out_shape=jax.ShapeDtypeStruct((N, C, 1), jnp.float32),
            grid_spec=pltpu.PrefetchScalarGridSpec(
                num_scalar_prefetch=0,
                grid=(N, nblk),
                in_specs=[
                    pl.BlockSpec((1, C, tP), lambda n, i: (n, 0, i)),
                    pl.BlockSpec((2, C, Ch), lambda n, i: (0, 0, 0)),
                ],
                out_specs=pl.BlockSpec((1, C, 1), lambda n, i: (n, 0, 0)),
                scratch_shapes=[pltpu.VMEM((1, C, 1), jnp.float32)],
            ),
            compiler_params=pltpu.CompilerParams(
                dimension_semantics=("parallel", "arbitrary"),
                vmem_limit_bytes=vmem_limit),
            cost_estimate=ce1,
        )(u3, w_pack)

        # ---- pass 2: out = U * z (lane-dense blocks, fully parallel grid) ----
        ce2 = pl.CostEstimate(
            flops=int(N * C * P_pad),
            transcendentals=0,
            bytes_accessed=int(2 * N * C * P_pad * itemsize + N * C * 4))
        out3 = pl.pallas_call(
            _scale_kernel,
            out_shape=jax.ShapeDtypeStruct((N, C, P_pad), U.dtype),
            grid_spec=pltpu.PrefetchScalarGridSpec(
                num_scalar_prefetch=0,
                grid=(N, nblk),
                in_specs=[
                    pl.BlockSpec((1, C, tP), lambda n, i: (n, 0, i)),
                    pl.BlockSpec((1, C, 1), lambda n, i: (n, 0, 0)),
                ],
                out_specs=pl.BlockSpec((1, C, tP), lambda n, i: (n, 0, i)),
            ),
            compiler_params=pltpu.CompilerParams(
                dimension_semantics=("parallel", "parallel"),
                vmem_limit_bytes=vmem_limit),
            cost_estimate=ce2,
        )(u3, z)

    if P_pad != P:
        out3 = out3[:, :, :P]
    return out3.reshape(N, C, D, H, W)


# ----------------------------------------------------------------------------
# pure-JAX reference (same math, no Pallas)
# ----------------------------------------------------------------------------
def cse3d_reference(U, w_sq, w_ex):
    hp = jax.lax.Precision.HIGHEST
    z = jnp.mean(U, axis=(2, 3, 4))                               # (N, C)
    s = jnp.einsum('nc,hc->nh', z, w_sq, precision=hp)            # (N, C//2)
    e = jnp.einsum('nh,ch->nc', s, w_ex, precision=hp)            # (N, C)
    sig = 1.0 / (1.0 + jnp.exp(-e))
    return U * sig[:, :, None, None, None]


def _run_case(key, shape, force_two_pass):
    N, C, D, H, W = shape
    k1, k2, k3 = jax.random.split(key, 3)
    U = jax.random.normal(k1, (N, C, D, H, W), jnp.float32)
    w_sq = jax.random.normal(k2, (C // 2, C), jnp.float32) * (1.0 / math.sqrt(C))
    w_ex = jax.random.normal(k3, (C, C // 2), jnp.float32) * (1.0 / math.sqrt(C // 2))

    out = jax.block_until_ready(
        cse3d_forward(U, w_sq, w_ex, force_two_pass=force_two_pass))
    assert out.shape == U.shape and out.dtype == U.dtype

    ref = cse3d_reference(U, w_sq, w_ex)
    if not bool(jnp.allclose(out, ref, atol=1e-4, rtol=1e-4)):
        raise SystemExit(
            f"mismatch shape={shape} two_pass={force_two_pass}: "
            f"max abs err = {float(jnp.max(jnp.abs(out - ref)))}")


# ----------------------------------------------------------------------------
if __name__ == "__main__":
    key = jax.random.PRNGKey(0)
    k1, k2, k3, k4 = jax.random.split(key, 4)
    # cSE3D(in_channels=8), P = 2048: fused single-pass path
    _run_case(k1, (2, 8, 8, 16, 16), force_two_pass=False)
    # same shape through the large-size two-pass fallback (reduce + rescale)
    _run_case(k2, (2, 8, 8, 16, 16), force_two_pass=True)
    # non-128-aligned spatial size (P = 315 -> padded to 384), odd batch/channels
    _run_case(k3, (1, 6, 5, 7, 9), force_two_pass=False)
    _run_case(k4, (1, 6, 5, 7, 9), force_two_pass=True)
    print("KERNEL_OK")
</pallas_src>

<mosaic_0001>
module attributes {stable_mosaic.version = 11 : i64} {
  func.func @kernel(%arg0: i32, %arg1: memref<1x8x2048xf32, #tpu.memory_space<vmem>>, %arg2: memref<2x8x4xf32, #tpu.memory_space<vmem>>, %arg3: memref<1x8x2048xf32, #tpu.memory_space<vmem>>) attributes {dimension_semantics = [#tpu.dimension_semantics<parallel>], iteration_bounds = array<i64: 2>, scalar_prefetch = 0 : i64, scratch_operands = 0 : i64, tpu.core_type = #tpu.core_type<tc>, window_params = [{transform_indices = @transform_0, window_bounds = array<i64: 1, 8, 2048>}, {pipeline_mode = #tpu.pipeline_mode<synchronous>, transform_indices = @transform_1, window_bounds = array<i64: 2, 8, 4>}, {transform_indices = @transform_2, window_bounds = array<i64: 1, 8, 2048>}]} {
    %c0 = arith.constant 0 : index
    %c0_0 = arith.constant 0 : index
    %c0_1 = arith.constant 0 : index
    %0 = vector.load %arg1[%c0, %c0_0, %c0_1] : memref<1x8x2048xf32, #tpu.memory_space<vmem>>, vector<1x8x2048xf32>
    %cst = arith.constant dense<0.000000e+00> : vector<1x8xf32>
    %1 = vector.multi_reduction <add>, %0, %cst [2] : vector<1x8x2048xf32> to vector<1x8xf32>
    %2 = vector.shape_cast %1 : vector<1x8xf32> to vector<1x8x1xf32>
    %3 = vector.shape_cast %2 : vector<1x8x1xf32> to vector<8x1xf32>
    %cst_2 = arith.constant 4.8828125E-4 : f32
    %4 = vector.broadcast %cst_2 : f32 to vector<8x1xf32>
    %5 = arith.mulf %3, %4 : vector<8x1xf32>
    %c0_3 = arith.constant 0 : index
    %c0_4 = arith.constant 0 : index
    %c0_5 = arith.constant 0 : index
    %6 = vector.load %arg2[%c0_3, %c0_4, %c0_5] : memref<2x8x4xf32, #tpu.memory_space<vmem>>, vector<1x8x4xf32>
    %7 = vector.shape_cast %6 : vector<1x8x4xf32> to vector<8x4xf32>
    %c1 = arith.constant 1 : index
    %c0_6 = arith.constant 0 : index
    %c0_7 = arith.constant 0 : index
    %8 = vector.load %arg2[%c1, %c0_6, %c0_7] : memref<2x8x4xf32, #tpu.memory_space<vmem>>, vector<1x8x4xf32>
    %9 = vector.shape_cast %8 : vector<1x8x4xf32> to vector<8x4xf32>
    %10 = vector.broadcast %5 : vector<8x1xf32> to vector<8x4xf32>
    %11 = arith.mulf %7, %10 : vector<8x4xf32>
    %cst_8 = arith.constant dense<0.000000e+00> : vector<4xf32>
    %12 = vector.multi_reduction <add>, %11, %cst_8 [0] : vector<8x4xf32> to vector<4xf32>
    %13 = vector.shape_cast %12 : vector<4xf32> to vector<1x4xf32>
    %14 = vector.broadcast %13 : vector<1x4xf32> to vector<8x4xf32>
    %15 = arith.mulf %9, %14 : vector<8x4xf32>
    %cst_9 = arith.constant dense<0.000000e+00> : vector<8xf32>
    %16 = vector.multi_reduction <add>, %15, %cst_9 [1] : vector<8x4xf32> to vector<8xf32>
    %17 = vector.shape_cast %16 : vector<8xf32> to vector<8x1xf32>
    %cst_10 = arith.constant 0.000000e+00 : f32
    %18 = vector.broadcast %cst_10 : f32 to vector<8x1xf32>
    %19 = arith.subf %18, %17 : vector<8x1xf32>
    %20 = math.exp %19 : vector<8x1xf32>
    %cst_11 = arith.constant 1.000000e+00 : f32
    %21 = vector.broadcast %cst_11 : f32 to vector<8x1xf32>
    %22 = arith.addf %21, %20 : vector<8x1xf32>
    %cst_12 = arith.constant 1.000000e+00 : f32
    %23 = vector.broadcast %cst_12 : f32 to vector<8x1xf32>
    %24 = arith.divf %23, %22 : vector<8x1xf32>
    %25 = vector.shape_cast %24 : vector<8x1xf32> to vector<1x8x1xf32>
    %26 = vector.broadcast %25 : vector<1x8x1xf32> to vector<1x8x2048xf32>
    %27 = arith.mulf %0, %26 : vector<1x8x2048xf32>
    %c0_13 = arith.constant 0 : index
    %c0_14 = arith.constant 0 : index
    %c0_15 = arith.constant 0 : index
    %28 = vector.load %arg3[%c0_13, %c0_14, %c0_15] : memref<1x8x2048xf32, #tpu.memory_space<vmem>>, vector<1x8x2048xf32>
    tpu.vector_store %arg3[%c0_13, %c0_14, %c0_15], %27 {strides = array<i32>} : memref<1x8x2048xf32, #tpu.memory_space<vmem>>, vector<1x8x2048xf32>,
    return
  }
  func.func @transform_0(%arg0: i32) -> (i32, i32, i32) {
    %c0_i32 = arith.constant 0 : i32
    %c0_i32_0 = arith.constant 0 : i32
    %c0_i32_1 = arith.constant 0 : i32
    return %arg0, %c0_i32, %c0_i32_0 : i32, i32, i32
  }
  func.func @transform_1(%arg0: i32) -> (i32, i32, i32) {
    %c0_i32 = arith.constant 0 : i32
    %c0_i32_0 = arith.constant 0 : i32
    %c0_i32_1 = arith.constant 0 : i32
    %c0_i32_2 = arith.constant 0 : i32
    return %c0_i32, %c0_i32_0, %c0_i32_1 : i32, i32, i32
  }
  func.func @transform_2(%arg0: i32) -> (i32, i32, i32) {
    %c0_i32 = arith.constant 0 : i32
    %c0_i32_0 = arith.constant 0 : i32
    %c0_i32_1 = arith.constant 0 : i32
    return %arg0, %c0_i32, %c0_i32_0 : i32, i32, i32
  }
}

</mosaic_0001>

<llo_original>
// kernel: cse3d_forward.1
$region0: #{cse3d_forward.1}
  #allocation0 [shape = 'u32[]', space=smem, size = 0x4, offset = 0x4, fixed_abs, tag = 'smem constant byte address 0x4 - core index']
  #allocation1 [shape = 'u32[144,128]{1,0:T(1,128)}', space=vmem, size = 0x12000, scoped, tag = 'internal scratch']
  %s0 = inlined_call_operand.vmem [shape: f32[2,8,2048], index: 0, kind: input, shape index: {}]
  %s1 = inlined_call_operand.vmem [shape: f32[2,8,4], index: 1, kind: input, shape index: {}]
  %s2 = inlined_call_operand.vmem [shape: f32[2,8,2048], index: 2, kind: output, shape index: {}]
  %s3 = sld [smem:[#allocation0]]
  $region41: #{cse3d_forward.1} parent=0
    _
  %s5 = ssub.s32 1, %s3
  %s6 = scalar_select 0, %s5, %s3
  loop: start=0, step=1, limit=4
  $region2: #{cse3d_forward.1} parent=0 // loop_pre_header
    _
  $region3: #{cse3d_forward.1} parent=0 // loop_header
    %s8 = sphi 0, %s12
    %p9 = scmp.ge.s32.totalorder %s8, 4
    %s18 = sphi 0, %s20
    %s21 = sphi 0, %s18
    %s22 = sphi 0, %s21
    %s38 = sphi 0, %s22
    %s42 = sphi 0, %s42
    %s44 = sphi 0, %s42
    %s45 = sphi 0, %s44
    %s59 = sphi 0, %s45
    %s65 = sphi 0, %s67
    %s68 = sphi 0, %s65
    %s69 = sphi 0, %s68
    %s85 = sphi 0, %s69
  $region4: #{cse3d_forward.1} parent=0 // loop_header_branch
    %11 = sbr.rel (%p9) target = $region8
  $region5: #{cse3d_forward.1} parent=0 // loop_body
    %s13 = ssub.s32 %s8, 1
    %s14 = ssub.s32 %s8, 2
    %s15 = sadd.s32 %s8, 1
    %s16 = ssub.s32 %s8, %s15
    %p17 = scmp.eq.s32.totalorder %s16, 0
    %s19 = sadd.s32 %s18, 1
    %s20 = scalar_select %p17, %s18, %s19
    %p23 = pneg %p17
    %p24 = scmp.eq.s32.totalorder %s8, 1
    %p25 = por %p23, %p24
    %p26 = scmp.ne.s32.totalorder %s18, %s21
    %p27 = scmp.eq.s32.totalorder %s8, 0
    %p28 = por %p26, %p27
    %p29 = scmp.ne.s32.totalorder %s18, %s21
    %p30 = scmp.eq.s32.totalorder %s13, 1
    %p31 = por %p29, %p30
    %p32 = scmp.ne.s32.totalorder %s21, %s22
    %p33 = scmp.eq.s32.totalorder %s13, 0
    %p34 = por %p32, %p33
    %p35 = scmp.ne.s32.totalorder %s21, %s22
    %p36 = scmp.eq.s32.totalorder %s14, 1
    %p37 = por %p35, %p36
    %p39 = scmp.ne.s32.totalorder %s22, %s38
    %p40 = scmp.eq.s32.totalorder %s14, 0
    %p41 = por %p39, %p40
    %s43 = sadd.s32 %s42, 1
    %p46 = scmp.eq.s32.totalorder %s8, 1
    %p47 = scmp.ne.s32.totalorder %s42, %s44
    %p48 = scmp.eq.s32.totalorder %s8, 0
    %p49 = por %p47, %p48
    %p50 = scmp.ne.s32.totalorder %s42, %s44
    %p51 = scmp.eq.s32.totalorder %s13, 1
    %p52 = por %p50, %p51
    %p53 = scmp.ne.s32.totalorder %s44, %s45
    %p54 = scmp.eq.s32.totalorder %s13, 0
    %p55 = por %p53, %p54
    %p56 = scmp.ne.s32.totalorder %s44, %s45
    %p57 = scmp.eq.s32.totalorder %s14, 1
    %p58 = por %p56, %p57
    %p60 = scmp.ne.s32.totalorder %s45, %s59
    %p61 = scmp.eq.s32.totalorder %s14, 0
    %p62 = por %p60, %p61
    %s63 = ssub.s32 %s8, %s15
    %p64 = scmp.eq.s32.totalorder %s63, 0
    %s66 = sadd.s32 %s65, 1
    %s67 = scalar_select %p64, %s65, %s66
    %p70 = pneg %p64
    %p71 = scmp.eq.s32.totalorder %s8, 1
    %p72 = por %p70, %p71
    %p73 = scmp.ne.s32.totalorder %s65, %s68
    %p74 = scmp.eq.s32.totalorder %s8, 0
    %p75 = por %p73, %p74
    %p76 = scmp.ne.s32.totalorder %s65, %s68
    %p77 = scmp.eq.s32.totalorder %s13, 1
    %p78 = por %p76, %p77
    %p79 = scmp.ne.s32.totalorder %s68, %s69
    %p80 = scmp.eq.s32.totalorder %s13, 0
    %p81 = por %p79, %p80
    %p82 = scmp.ne.s32.totalorder %s68, %s69
    %p83 = scmp.eq.s32.totalorder %s14, 1
    %p84 = por %p82, %p83
    %p86 = scmp.ne.s32.totalorder %s69, %s85
    %p87 = scmp.eq.s32.totalorder %s14, 0
    %p88 = por %p86, %p87
    %p89 = scmp.le.s32.totalorder 1, %s8
    %p90 = scmp.lt.s32.totalorder %s8, 3
    %p91 = pnand %p89, %p90
    %p92 = pneg %p91
    // Predicated region
    $region9: #{cse3d_forward.1} parent=5 // pred_check
      _
    $region10: #{cse3d_forward.1} parent=5 // pred_check_branch
      %94 = sbr.rel (%p91) target = $region12
    $region11: #{cse3d_forward.1} parent=5 // pred_region
      %s95 = ssub.s32 %s8, 1
      // Predicated region
      $region13: #{cse3d_forward.1} parent=11 // pred_check
        %p96 = pneg %p55
      $region14: #{cse3d_forward.1} parent=11 // pred_check_branch
        %98 = sbr.rel (%p96) target = $region16
      $region15: #{cse3d_forward.1} parent=11 // pred_region
        _
      $region16: #{cse3d_forward.1} parent=11 // pred_fallthru
        _
    $region12: #{cse3d_forward.1} parent=5 // pred_fallthru
      _
    %p99 = scmp.lt.s32.totalorder %s8, 2
    // Predicated region
    $region17: #{cse3d_forward.1} parent=5 // pred_check
      %p100 = pneg %p99
    $region18: #{cse3d_forward.1} parent=5 // pred_check_branch
      %102 = sbr.rel (%p100) target = $region20
    $region19: #{cse3d_forward.1} parent=5 // pred_region
      // Predicated region
      $region21: #{cse3d_forward.1} parent=19 // pred_check
        %p103 = pneg %p28
      $region22: #{cse3d_forward.1} parent=19 // pred_check_branch
        %105 = sbr.rel (%p103) target = $region24
      $region23: #{cse3d_forward.1} parent=19 // pred_region
        %p106 = scmp.lt.s32.totalorder %s8, 1
        %s107 = scalar_select %p106, %s8, 1
        %s108 = smul.addr %s107, 16
        %s109 = smul.addr %s108, 8
        %s110 = scalar_lea.vmem %s0, %s109
      $region24: #{cse3d_forward.1} parent=19 // pred_fallthru
        _
    $region20: #{cse3d_forward.1} parent=5 // pred_fallthru
      _
    %p111 = scmp.le.s32.totalorder 1, %s8
    %p112 = scmp.lt.s32.totalorder %s8, 3
    %p113 = pnand %p111, %p112
    %p114 = pneg %p113
    // Predicated region
    $region25: #{cse3d_forward.1} parent=5 // pred_check
      _
    $region26: #{cse3d_forward.1} parent=5 // pred_check_branch
      %116 = sbr.rel (%p113) target = $region28
    $region27: #{cse3d_forward.1} parent=5 // pred_region
      %s117 = ssub.s32 %s8, 1
      %p118 = scmp.lt.s32.totalorder %s13, 1
      %s119 = scalar_select %p118, %s13, 1
      %s120 = smul.addr %s119, 16
      %s121 = smul.addr %s120, 8
      %s122 = scalar_lea.vmem %s0, %s121
      %p123 = pneg %p34
      %p124 = pneg %p31
      %p125 = pneg %p55
      %p126 = pneg %p52
      %p127 = pneg %p81
      %p128 = pneg %p78
      %p129 = scmp.lt.s32.totalorder %s13, 1
      %s130 = scalar_select %p129, %s13, 1
      %s131 = smul.addr %s130, 16
      %s132 = smul.addr %s131, 8
      %s133 = scalar_lea.vmem %s2, %s132
      %p134 = scmp.lt.s32.totalorder %s13, 1
      %s135 = scalar_select %p134, %s13, 1
      %s136 = smul.addr %s135, 16
      %s137 = smul.addr %s136, 8
      %s138 = scalar_lea.vmem %s0, %s137
      %p139 = scmp.lt.s32.totalorder %s13, 1
      %s140 = scalar_select %p139, %s13, 1
      %s141 = smul.addr %s140, 16
      %s142 = smul.addr %s141, 8
      %s143 = scalar_lea.vmem %s2, %s142
      %v144 = vld [vmem:[%s138] sm:$0xff]
      %v145 = vld [vmem:[%s138 + $0x8] sm:$0xff]
      %v146 = vld [vmem:[%s138 + $0x10] sm:$0xff]
      %v147 = vld [vmem:[%s138 + $0x18] sm:$0xff]
      %v148 = vld [vmem:[%s138 + $0x20] sm:$0xff]
      %v149 = vld [vmem:[%s138 + $0x28] sm:$0xff]
      %v150 = vld [vmem:[%s138 + $0x30] sm:$0xff]
      %v151 = vld [vmem:[%s138 + $0x38] sm:$0xff]
      %v152 = vld [vmem:[%s138 + $0x40] sm:$0xff]
      %v153 = vld [vmem:[%s138 + $0x48] sm:$0xff]
      %v154 = vld [vmem:[%s138 + $0x50] sm:$0xff]
      %v155 = vld [vmem:[%s138 + $0x58] sm:$0xff]
      %v156 = vld [vmem:[%s138 + $0x60] sm:$0xff]
      %v157 = vld [vmem:[%s138 + $0x68] sm:$0xff]
      %v158 = vld [vmem:[%s138 + $0x70] sm:$0xff]
      %v159 = vld [vmem:[%s138 + $0x78] sm:$0xff]
      %v160 = vadd.f32 %v144, %v145
      %v161 = vadd.f32 %v160, %v146
      %v162 = vadd.f32 %v161, %v147
      %v163 = vadd.f32 %v162, %v148
      %v164 = vadd.f32 %v163, %v149
      %v165 = vadd.f32 %v164, %v150
      %v166 = vadd.f32 %v165, %v151
      %v167 = vadd.f32 %v166, %v152
      %v168 = vadd.f32 %v167, %v153
      %v169 = vadd.f32 %v168, %v154
      %v170 = vadd.f32 %v169, %v155
      %v171 = vadd.f32 %v170, %v156
      %v172 = vadd.f32 %v171, %v157
      %v173 = vadd.f32 %v172, %v158
      %v174 = vadd.f32 %v173, %v159
      %175 = vadd.xlane.f32.xlu0 %v174
      %v176 = vpop.xlane.xlu0 %175
      %v177 = vmul.f32 %v176, 0.00048828125
      %v178 = vld [vmem:[%s1] sm:$0xff]
      %s179 = scalar_lea.vmem %s1, 8
      %v180 = vld [vmem:[%s179] sm:$0xff]
      %v181 = vmul.f32 %v178, %v177
      %vm182 = vcmask 31744
      %v183 = vsel %vm182, %v181, 0.0
      %v184 = vrot.slane %v183, 4
      %v185 = vadd.f32 %v183, %v184
      %v186 = vrot.slane %v185, 2
      %v187 = vadd.f32 %v185, %v186
      %v188 = vrot.slane %v187, 1
      %v189 = vadd.f32 %v187, %v188
      %v190 = vmul.f32 %v180, %v189
      %v191 = vsel %vm182, %v190, 0.0
      %192 = vadd.xlane.f32.xlu0 %v191
      %v193 = vpop.xlane.xlu0 %192
      %v194 = vsub.f32 0.0, %v193
      %v195 = vmul.f32 %v194, 1.442695
      %v196 = vpow.pop %v195
      %v197 = vadd.f32 %v196, 1.0
      %v198 = vrcp.pop %v197
      %v199 = vmul.f32 1.0, %v198
      %v200 = vmul.f32 %v144, %v199
      %v201 = vmul.f32 %v145, %v199
      %v202 = vmul.f32 %v146, %v199
      %v203 = vmul.f32 %v147, %v199
      %v204 = vmul.f32 %v148, %v199
      %v205 = vmul.f32 %v149, %v199
      %v206 = vmul.f32 %v150, %v199
      %v207 = vmul.f32 %v151, %v199
      %v208 = vmul.f32 %v152, %v199
      %v209 = vmul.f32 %v153, %v199
      %v210 = vmul.f32 %v154, %v199
      %v211 = vmul.f32 %v155, %v199
      %v212 = vmul.f32 %v156, %v199
      %v213 = vmul.f32 %v157, %v199
      %v214 = vmul.f32 %v158, %v199
      %v215 = vmul.f32 %v159, %v199
      %216 = vst [vmem:[%s143] sm:$0xff] %v200
      %217 = vst [vmem:[%s143 + $0x8] sm:$0xff] %v201
      %218 = vst [vmem:[%s143 + $0x10] sm:$0xff] %v202
      %219 = vst [vmem:[%s143 + $0x18] sm:$0xff] %v203
      %220 = vst [vmem:[%s143 + $0x20] sm:$0xff] %v204
      %221 = vst [vmem:[%s143 + $0x28] sm:$0xff] %v205
      %222 = vst [vmem:[%s143 + $0x30] sm:$0xff] %v206
      %223 = vst [vmem:[%s143 + $0x38] sm:$0xff] %v207
      %224 = vst [vmem:[%s143 + $0x40] sm:$0xff] %v208
      %225 = vst [vmem:[%s143 + $0x48] sm:$0xff] %v209
      %226 = vst [vmem:[%s143 + $0x50] sm:$0xff] %v210
      %227 = vst [vmem:[%s143 + $0x58] sm:$0xff] %v211
      %228 = vst [vmem:[%s143 + $0x60] sm:$0xff] %v212
      %229 = vst [vmem:[%s143 + $0x68] sm:$0xff] %v213
      %230 = vst [vmem:[%s143 + $0x70] sm:$0xff] %v214
      %231 = vst [vmem:[%s143 + $0x78] sm:$0xff] %v215
      %p232 = scmp.lt.s32.totalorder %s13, 1
      %s233 = scalar_select %p232, %s13, 1
      %s234 = smul.addr %s233, 16
      %s235 = smul.addr %s234, 8
      %s236 = scalar_lea.vmem %s2, %s235
      // Predicated region
      $region29: #{cse3d_forward.1} parent=27 // pred_check
        %p237 = pneg %p78
      $region30: #{cse3d_forward.1} parent=27 // pred_check_branch
        %239 = sbr.rel (%p237) target = $region32
      $region31: #{cse3d_forward.1} parent=27 // pred_region
        _
      $region32: #{cse3d_forward.1} parent=27 // pred_fallthru
        _
    $region28: #{cse3d_forward.1} parent=5 // pred_fallthru
      _
    %p240 = scmp.le.s32.totalorder 2, %s8
    // Predicated region
    $region33: #{cse3d_forward.1} parent=5 // pred_check
      %p241 = pneg %p240
    $region34: #{cse3d_forward.1} parent=5 // pred_check_branch
      %243 = sbr.rel (%p241) target = $region36
    $region35: #{cse3d_forward.1} parent=5 // pred_region
      %s244 = ssub.s32 %s8, 2
      // Predicated region
      $region37: #{cse3d_forward.1} parent=35 // pred_check
        %p245 = pneg %p84
      $region38: #{cse3d_forward.1} parent=35 // pred_check_branch
        %247 = sbr.rel (%p245) target = $region40
      $region39: #{cse3d_forward.1} parent=35 // pred_region
        %p248 = scmp.lt.s32.totalorder %s14, 1
        %s249 = scalar_select %p248, %s14, 1
        %s250 = smul.addr %s249, 16
        %s251 = smul.addr %s250, 8
        %s252 = scalar_lea.vmem %s2, %s251
      $region40: #{cse3d_forward.1} parent=35 // pred_fallthru
        _
    $region36: #{cse3d_forward.1} parent=5 // pred_fallthru
      _
  $region6: #{cse3d_forward.1} parent=0 // loop_footer
    %s12 = sadd.s32 1, %s8
  $region7: #{cse3d_forward.1} parent=0 // loop_footer_branch
    %7 = sbr.rel target = $region3
  $region8: #{cse3d_forward.1} parent=0 // loop_exit
    _

</llo_original>
